<compile_context>
chip_gen: v7x
topology: tpu7x:2x2x1
jax: 0.10.0
libtpu: 0.0.40
codegen_flags: <defaults>
</compile_context>

<pallas_src>
import functools

import numpy as np
import jax
import jax.numpy as jnp
from jax import lax
from jax.experimental import pallas as pl
from jax.experimental.pallas import tpu as pltpu


# ---------------------------------------------------------------------------
# Host-side parameter setup: per-axis prolongation matrices (cached by size).
# ---------------------------------------------------------------------------
@functools.lru_cache(maxsize=None)
def _upsample_matrix_np(n: int) -> np.ndarray:
    """MSE-minimizing x2 upsampling matrix for linear splines, circular bound.

    Returns W of shape (2n, n) such that d = W @ c are the fine-grid spline
    coefficients exactly reproducing (in the L2 sense) the coarse spline, with
    'edges aligned'.  (The x2 displacement rescale is folded in later.)
    """
    m = 2 * n
    # U: projection of the (dilated, shifted) coarse basis onto the fine basis.
    U = np.zeros((m, n), dtype=np.float64)
    for i in range(n):
        U[2 * i, i] += 70.0 / 96.0
        U[2 * i, (i - 1) % n] += 25.0 / 96.0
        U[2 * i, (i + 1) % n] += 1.0 / 96.0
        U[2 * i + 1, i] += 70.0 / 96.0
        U[2 * i + 1, (i + 1) % n] += 25.0 / 96.0
        U[2 * i + 1, (i - 1) % n] += 1.0 / 96.0
    # G: circulant Gram matrix of fine linear B-splines: [1/6, 2/3, 1/6].
    G = np.zeros((m, m), dtype=np.float64)
    for j in range(m):
        G[j, j] += 4.0 / 6.0
        G[j, (j - 1) % m] += 1.0 / 6.0
        G[j, (j + 1) % m] += 1.0 / 6.0
    W = np.linalg.solve(G, U)
    return W.astype(np.float32)


def _largest_divisor_at_most(n: int, cap: int) -> int:
    cap = max(1, min(cap, n))
    for d in range(cap, 0, -1):
        if n % d == 0:
            return d
    return 1


def _pick_slabs_per_step(n_slabs: int, h: int, w: int, itemsize: int) -> int:
    """Choose how many (H, W) slabs to process per grid step."""
    bytes_in = h * w * itemsize
    bytes_out = 4 * h * w * itemsize
    bytes_tmp = 2 * h * w * 4                       # f32 intermediate (TB, H, 2W)
    # Double-buffered in/out blocks + f32 compute intermediates, per slab.
    per_slab = 2 * bytes_in + 2 * bytes_out + 2 * bytes_tmp
    weight_bytes = 4 * (2 * h * h + 2 * w * w)      # Wh (2H,H) + WwT (W,2W), f32
    vmem_budget = 36 * 1024 * 1024                  # keep well under v7x's 64 MiB
    cap_vmem = max(1, (vmem_budget - 2 * weight_bytes) // per_slab)
    cap_dma = max(1, (1 * 1024 * 1024) // bytes_in)  # ~1 MiB input block target
    tb = min(n_slabs, cap_vmem, cap_dma)
    if n_slabs >= 2:
        # Keep >= 2 grid iterations so the 'parallel' axis can shard across the
        # two TensorCores on v7x.
        tb = min(tb, (n_slabs + 1) // 2)
    return _largest_divisor_at_most(n_slabs, tb)


# ---------------------------------------------------------------------------
# Pallas kernel: two separable prolongation matmuls over a packed slab block.
# ---------------------------------------------------------------------------
def _spline_up2_kernel(x_ref, wh2_ref, wwt_ref, o_ref):
    # x_ref  : (TB, H, W)    TB packed (batch*channel) slabs
    # wh2_ref: (2H, H)       H-axis prolongation matrix, x2 rescale folded in
    # wwt_ref: (W, 2W)       W-axis prolongation matrix, transposed
    # o_ref  : (TB, 2H, 2W)
    tb, h, w = x_ref.shape
    h2, w2 = 2 * h, 2 * w

    x = x_ref[...].astype(jnp.float32)                          # (TB, H, W)

    # W axis: one flat, lane-dense MXU matmul over the packed slab batch.
    t = jnp.dot(x.reshape(tb * h, w), wwt_ref[...],
                preferred_element_type=jnp.float32)             # (TB*H, 2W)
    t = t.reshape(tb, h, w2)

    # H axis: batched matmul sharing the (x2-scaled) Wh across slabs.
    wh = jnp.broadcast_to(wh2_ref[...], (tb, h2, h))            # once per step
    out = lax.dot_general(
        wh, t,
        dimension_numbers=(((2,), (1,)), ((0,), (0,))),
        preferred_element_type=jnp.float32)                     # (TB, 2H, 2W)

    o_ref[...] = out.astype(o_ref.dtype)


def _make_weight_spec(shape, single_buffer: bool) -> pl.BlockSpec:
    if single_buffer:
        # Constant across the grid -> no need to double-buffer (saves VMEM).
        return pl.BlockSpec(shape, lambda n: (0,) * len(shape),
                            pipeline_mode=pl.Buffered(1))
    return pl.BlockSpec(shape, lambda n: (0,) * len(shape))


def _spline_up2_call(x, wh2, wwt, tb, single_buffer_weights: bool):
    n, h, w = x.shape
    h2, w2 = 2 * h, 2 * w
    return pl.pallas_call(
        _spline_up2_kernel,
        out_shape=jax.ShapeDtypeStruct((n, h2, w2), x.dtype),
        grid_spec=pltpu.PrefetchScalarGridSpec(
            num_scalar_prefetch=0,
            grid=(n // tb,),
            in_specs=[
                pl.BlockSpec((tb, h, w), lambda i: (i, 0, 0)),
                _make_weight_spec((h2, h), single_buffer_weights),
                _make_weight_spec((w, w2), single_buffer_weights),
            ],
            out_specs=pl.BlockSpec((tb, h2, w2), lambda i: (i, 0, 0)),
        ),
        compiler_params=pltpu.CompilerParams(
            dimension_semantics=("parallel",),
            vmem_limit_bytes=48 * 1024 * 1024,
        ),
    )(x, wh2, wwt)


def spline_up2(flow: jnp.ndarray) -> jnp.ndarray:
    """Pallas implementation of SplineUp2.forward (order='linear', bound='dft').

    flow: (B, ndim, H, W)  ->  (B, ndim, 2H, 2W)
    """
    b, c, h, w = flow.shape
    n = b * c
    x = flow.reshape(n, h, w)

    # Fold the x2 displacement rescale (coarse -> fine voxel units) into Wh.
    wh2 = jnp.asarray(2.0 * _upsample_matrix_np(h), dtype=jnp.float32)   # (2H, H)
    wwt = jnp.asarray(_upsample_matrix_np(w).T, dtype=jnp.float32)       # (W, 2W)

    tb = _pick_slabs_per_step(n, h, w, jnp.dtype(flow.dtype).itemsize)

    try:
        out = _spline_up2_call(x, wh2, wwt, tb, single_buffer_weights=True)
    except Exception:
        # TODO(synk): pl.Buffered(1) (single-buffering the constant weight
        # operands) unsupported on this jax version; fall back to defaults.
        out = _spline_up2_call(x, wh2, wwt, tb, single_buffer_weights=False)

    return out.reshape(b, c, 2 * h, 2 * w)


def spline_up2_ref(flow: jnp.ndarray) -> jnp.ndarray:
    """Plain-JAX reference (same math, no Pallas) for sanity checking."""
    _, _, h, w = flow.shape
    wh = jnp.asarray(_upsample_matrix_np(h))    # (2H, H)
    ww = jnp.asarray(_upsample_matrix_np(w))    # (2W, W)
    return 2.0 * jnp.einsum("ij,bcjk,lk->bcil", wh, flow, ww)


if __name__ == "__main__":
    key = jax.random.PRNGKey(0)
    k0, k1 = jax.random.split(key)

    # (batch=2, ndim=2 flow components, 16x16 spatial grid)
    flow = jax.random.normal(k0, (2, 2, 16, 16), dtype=jnp.float32)
    out = jax.block_until_ready(spline_up2(flow))
    assert out.shape == (2, 2, 32, 32), out.shape
    ref = spline_up2_ref(flow)
    assert jnp.allclose(out, ref, atol=1e-4, rtol=1e-4), \
        float(jnp.max(jnp.abs(out - ref)))

    # Second shape: non-square spatial grid, lane-dense (2W=128) output blocks.
    flow2 = jax.random.normal(k1, (3, 2, 32, 64), dtype=jnp.float32)
    out2 = jax.block_until_ready(spline_up2(flow2))
    assert out2.shape == (3, 2, 64, 128), out2.shape
    ref2 = spline_up2_ref(flow2)
    assert jnp.allclose(out2, ref2, atol=1e-4, rtol=1e-4), \
        float(jnp.max(jnp.abs(out2 - ref2)))

    print("KERNEL_OK")
</pallas_src>

<mosaic_0001>
module attributes {stable_mosaic.version = 11 : i64} {
  func.func @_spline_up2_kernel(%arg0: i32, %arg1: memref<2x16x16xf32, #tpu.memory_space<vmem>>, %arg2: memref<32x16xf32, #tpu.memory_space<vmem>>, %arg3: memref<16x32xf32, #tpu.memory_space<vmem>>, %arg4: memref<2x32x32xf32, #tpu.memory_space<vmem>>) attributes {dimension_semantics = [#tpu.dimension_semantics<parallel>], iteration_bounds = array<i64: 2>, scalar_prefetch = 0 : i64, scratch_operands = 0 : i64, tpu.core_type = #tpu.core_type<tc>, window_params = [{transform_indices = @transform_0, window_bounds = array<i64: 2, 16, 16>}, {pipeline_mode = #tpu.pipeline_mode<synchronous>, transform_indices = @transform_1, window_bounds = array<i64: 32, 16>}, {pipeline_mode = #tpu.pipeline_mode<synchronous>, transform_indices = @transform_2, window_bounds = array<i64: 16, 32>}, {transform_indices = @transform_3, window_bounds = array<i64: 2, 32, 32>}]} {
    %c0 = arith.constant 0 : index
    %c0_0 = arith.constant 0 : index
    %c0_1 = arith.constant 0 : index
    %0 = vector.load %arg1[%c0, %c0_0, %c0_1] : memref<2x16x16xf32, #tpu.memory_space<vmem>>, vector<2x16x16xf32>
    %1 = vector.shape_cast %0 : vector<2x16x16xf32> to vector<32x16xf32>
    %c0_2 = arith.constant 0 : index
    %c0_3 = arith.constant 0 : index
    %2 = vector.load %arg3[%c0_2, %c0_3] : memref<16x32xf32, #tpu.memory_space<vmem>>, vector<16x32xf32>
    %cst = arith.constant dense<0.000000e+00> : vector<32x32xf32>
    %3 = tpu.matmul %1, %2, %cst {dimension_numbers = #tpu.dot_dimension_numbers<[1], [0], [0], [1], [0, 0, 1, 1], [], []>} : vector<32x16xf32>, vector<16x32xf32>, vector<32x32xf32> -> vector<32x32xf32>
    %4 = vector.shape_cast %3 : vector<32x32xf32> to vector<2x16x32xf32>
    %c0_4 = arith.constant 0 : index
    %c0_5 = arith.constant 0 : index
    %5 = vector.load %arg2[%c0_4, %c0_5] : memref<32x16xf32, #tpu.memory_space<vmem>>, vector<32x16xf32>
    %6 = vector.shape_cast %5 : vector<32x16xf32> to vector<1x32x16xf32>
    %7 = vector.broadcast %6 : vector<1x32x16xf32> to vector<2x32x16xf32>
    %cst_6 = arith.constant dense<0.000000e+00> : vector<2x32x32xf32>
    %8 = tpu.matmul %7, %4, %cst_6 {dimension_numbers = #tpu.dot_dimension_numbers<[2], [1], [1], [2], [0, 0, 0, 1, 1, 2], [0], [0]>} : vector<2x32x16xf32>, vector<2x16x32xf32>, vector<2x32x32xf32> -> vector<2x32x32xf32>
    %c0_7 = arith.constant 0 : index
    %c0_8 = arith.constant 0 : index
    %c0_9 = arith.constant 0 : index
    %9 = vector.load %arg4[%c0_7, %c0_8, %c0_9] : memref<2x32x32xf32, #tpu.memory_space<vmem>>, vector<2x32x32xf32>
    tpu.vector_store %arg4[%c0_7, %c0_8, %c0_9], %8 {strides = array<i32>} : memref<2x32x32xf32, #tpu.memory_space<vmem>>, vector<2x32x32xf32>,
    return
  }
  func.func @transform_0(%arg0: i32) -> (i32, i32, i32) {
    %c0_i32 = arith.constant 0 : i32
    %c0_i32_0 = arith.constant 0 : i32
    %c0_i32_1 = arith.constant 0 : i32
    return %arg0, %c0_i32, %c0_i32_0 : i32, i32, i32
  }
  func.func @transform_1(%arg0: i32) -> (i32, i32) {
    %c0_i32 = arith.constant 0 : i32
    %c0_i32_0 = arith.constant 0 : i32
    %c0_i32_1 = arith.constant 0 : i32
    return %c0_i32, %c0_i32_0 : i32, i32
  }
  func.func @transform_2(%arg0: i32) -> (i32, i32) {
    %c0_i32 = arith.constant 0 : i32
    %c0_i32_0 = arith.constant 0 : i32
    %c0_i32_1 = arith.constant 0 : i32
    return %c0_i32, %c0_i32_0 : i32, i32
  }
  func.func @transform_3(%arg0: i32) -> (i32, i32, i32) {
    %c0_i32 = arith.constant 0 : i32
    %c0_i32_0 = arith.constant 0 : i32
    %c0_i32_1 = arith.constant 0 : i32
    return %arg0, %c0_i32, %c0_i32_0 : i32, i32, i32
  }
}

module attributes {stable_mosaic.version = 11 : i64} {
  func.func @_spline_up2_kernel(%arg0: i32, %arg1: memref<2x16x16xf32, #tpu.memory_space<vmem>>, %arg2: memref<32x16xf32, #tpu.memory_space<vmem>>, %arg3: memref<16x32xf32, #tpu.memory_space<vmem>>, %arg4: memref<2x32x32xf32, #tpu.memory_space<vmem>>) attributes {dimension_semantics = [#tpu.dimension_semantics<parallel>], iteration_bounds = array<i64: 2>, scalar_prefetch = 0 : i64, scratch_operands = 0 : i64, tpu.core_type = #tpu.core_type<tc>, window_params = [{transform_indices = @transform_0, window_bounds = array<i64: 2, 16, 16>}, {pipeline_mode = #tpu.pipeline_mode<synchronous>, transform_indices = @transform_1, window_bounds = array<i64: 32, 16>}, {pipeline_mode = #tpu.pipeline_mode<synchronous>, transform_indices = @transform_2, window_bounds = array<i64: 16, 32>}, {transform_indices = @transform_3, window_bounds = array<i64: 2, 32, 32>}]} {
    %c0 = arith.constant 0 : index
    %c0_0 = arith.constant 0 : index
    %c0_1 = arith.constant 0 : index
    %0 = vector.load %arg1[%c0, %c0_0, %c0_1] : memref<2x16x16xf32, #tpu.memory_space<vmem>>, vector<2x16x16xf32>
    %1 = vector.shape_cast %0 : vector<2x16x16xf32> to vector<32x16xf32>
    %c0_2 = arith.constant 0 : index
    %c0_3 = arith.constant 0 : index
    %2 = vector.load %arg3[%c0_2, %c0_3] : memref<16x32xf32, #tpu.memory_space<vmem>>, vector<16x32xf32>
    %cst = arith.constant dense<0.000000e+00> : vector<32x32xf32>
    %3 = tpu.matmul %1, %2, %cst {dimension_numbers = #tpu.dot_dimension_numbers<[1], [0], [0], [1], [0, 0, 1, 1], [], []>} : vector<32x16xf32>, vector<16x32xf32>, vector<32x32xf32> -> vector<32x32xf32>
    %4 = vector.shape_cast %3 : vector<32x32xf32> to vector<2x16x32xf32>
    %c0_4 = arith.constant 0 : index
    %c0_5 = arith.constant 0 : index
    %5 = vector.load %arg2[%c0_4, %c0_5] : memref<32x16xf32, #tpu.memory_space<vmem>>, vector<32x16xf32>
    %6 = vector.shape_cast %5 : vector<32x16xf32> to vector<1x32x16xf32>
    %7 = vector.broadcast %6 : vector<1x32x16xf32> to vector<2x32x16xf32>
    %cst_6 = arith.constant dense<0.000000e+00> : vector<2x32x32xf32>
    %8 = tpu.matmul %7, %4, %cst_6 {dimension_numbers = #tpu.dot_dimension_numbers<[2], [1], [1], [2], [0, 0, 0, 1, 1, 2], [0], [0]>} : vector<2x32x16xf32>, vector<2x16x32xf32>, vector<2x32x32xf32> -> vector<2x32x32xf32>
    %c0_7 = arith.constant 0 : index
    %c0_8 = arith.constant 0 : index
    %c0_9 = arith.constant 0 : index
    %9 = vector.load %arg4[%c0_7, %c0_8, %c0_9] : memref<2x32x32xf32, #tpu.memory_space<vmem>>, vector<2x32x32xf32>
    tpu.vector_store %arg4[%c0_7, %c0_8, %c0_9], %8 {strides = array<i32>} : memref<2x32x32xf32, #tpu.memory_space<vmem>>, vector<2x32x32xf32>,
    return
  }
  func.func @transform_0(%arg0: i32) -> (i32, i32, i32) {
    %c0_i32 = arith.constant 0 : i32
    %c0_i32_0 = arith.constant 0 : i32
    %c0_i32_1 = arith.constant 0 : i32
    return %arg0, %c0_i32, %c0_i32_0 : i32, i32, i32
  }
  func.func @transform_1(%arg0: i32) -> (i32, i32) {
    %c0_i32 = arith.constant 0 : i32
    %c0_i32_0 = arith.constant 0 : i32
    %c0_i32_1 = arith.constant 0 : i32
    return %c0_i32, %c0_i32_0 : i32, i32
  }
  func.func @transform_2(%arg0: i32) -> (i32, i32) {
    %c0_i32 = arith.constant 0 : i32
    %c0_i32_0 = arith.constant 0 : i32
    %c0_i32_1 = arith.constant 0 : i32
    return %c0_i32, %c0_i32_0 : i32, i32
  }
  func.func @transform_3(%arg0: i32) -> (i32, i32, i32) {
    %c0_i32 = arith.constant 0 : i32
    %c0_i32_0 = arith.constant 0 : i32
    %c0_i32_1 = arith.constant 0 : i32
    return %arg0, %c0_i32, %c0_i32_0 : i32, i32, i32
  }
}

</mosaic_0001>

<llo_original>
// kernel: tpu_custom_call.1
$region0: #{tpu_custom_call.1}
  #allocation0 [shape = 'u32[]', space=smem, size = 0x4, offset = 0x4, fixed_abs, tag = 'smem constant byte address 0x4 - core index']
  #allocation1 [shape = 'u32[144,128]{1,0:T(1,128)}', space=vmem, size = 0x12000, scoped, tag = 'internal scratch']
  %s0 = inlined_call_operand.hbm [shape: f32[4,16,16], index: 0, kind: input, shape index: {}]
  %s1 = inlined_call_operand.vmem [shape: f32[32,16], index: 1, kind: input, shape index: {}]
  %s2 = inlined_call_operand.vmem [shape: f32[16,32], index: 2, kind: input, shape index: {}]
  %s3 = inlined_call_operand.hbm [shape: f32[4,32,32], index: 3, kind: output, shape index: {}]
  %s4 = sld [smem:[#allocation0]]
  $region49: #{tpu_custom_call.1} parent=0
    _
  %s6 = ssub.s32 1, %s4
  %s7 = scalar_select 0, %s6, %s4
  $region1: #{tpu_custom_call.1} parent=0
    #allocation2 [shape = 'u8[32768]{0}', space=vmem, size = 0x8000, scoped, tag = 'input window, operand 0']
    #allocation3 [shape = 's32[2]{0}', space=sflag, size = 0x8, scoped, tag = 'scoped memory for tpu_custom_call.1']
    #allocation4 [shape = 's32[2]{0}', space=sflag, size = 0x8, scoped, tag = 'scoped memory for tpu_custom_call.1']
    #allocation5 [shape = 'u8[65536]{0}', space=vmem, size = 0x10000, scoped, tag = 'output window, operand 0']
    %8 = vsyncpa [#allocation3], 0
    %s9 = scalar_lea.sflag [#allocation3], 1
    %10 = vsyncpa %s9, 0
    %11 = vsyncpa [#allocation4], 0
    %s12 = scalar_lea.sflag [#allocation4], 1
    %13 = vsyncpa %s12, 0
    loop: start=0, step=1, limit=4
    $region2: #{tpu_custom_call.1} parent=1 // loop_pre_header
      _
    $region3: #{tpu_custom_call.1} parent=1 // loop_header
      %s15 = sphi 0, %s19
      %p16 = scmp.ge.s32.totalorder %s15, 4
      %s25 = sphi 0, %s27
      %s28 = sphi 0, %s25
      %s29 = sphi 0, %s28
      %s45 = sphi 0, %s29
      %s49 = sphi 0, %s49
      %s51 = sphi 0, %s49
      %s52 = sphi 0, %s51
      %s66 = sphi 0, %s52
      %s70 = sphi 0, %s70
      %s72 = sphi 0, %s70
      %s73 = sphi 0, %s72
      %s87 = sphi 0, %s73
      %s93 = sphi 0, %s95
      %s96 = sphi 0, %s93
      %s97 = sphi 0, %s96
      %s113 = sphi 0, %s97
    $region4: #{tpu_custom_call.1} parent=1 // loop_header_branch
      %18 = sbr.rel (%p16) target = $region8
    $region5: #{tpu_custom_call.1} parent=1 // loop_body
      %s20 = ssub.s32 %s15, 1
      %s21 = ssub.s32 %s15, 2
      %s22 = sadd.s32 %s15, 1
      %s23 = ssub.s32 %s15, %s22
      %p24 = scmp.eq.s32.totalorder %s23, 0
      %s26 = sadd.s32 %s25, 1
      %s27 = scalar_select %p24, %s25, %s26
      %p30 = pneg %p24
      %p31 = scmp.eq.s32.totalorder %s15, 1
      %p32 = por %p30, %p31
      %p33 = scmp.ne.s32.totalorder %s25, %s28
      %p34 = scmp.eq.s32.totalorder %s15, 0
      %p35 = por %p33, %p34
      %p36 = scmp.ne.s32.totalorder %s25, %s28
      %p37 = scmp.eq.s32.totalorder %s20, 1
      %p38 = por %p36, %p37
      %p39 = scmp.ne.s32.totalorder %s28, %s29
      %p40 = scmp.eq.s32.totalorder %s20, 0
      %p41 = por %p39, %p40
      %p42 = scmp.ne.s32.totalorder %s28, %s29
      %p43 = scmp.eq.s32.totalorder %s21, 1
      %p44 = por %p42, %p43
      %p46 = scmp.ne.s32.totalorder %s29, %s45
      %p47 = scmp.eq.s32.totalorder %s21, 0
      %p48 = por %p46, %p47
      %s50 = sadd.s32 %s49, 1
      %p53 = scmp.eq.s32.totalorder %s15, 1
      %p54 = scmp.ne.s32.totalorder %s49, %s51
      %p55 = scmp.eq.s32.totalorder %s15, 0
      %p56 = por %p54, %p55
      %p57 = scmp.ne.s32.totalorder %s49, %s51
      %p58 = scmp.eq.s32.totalorder %s20, 1
      %p59 = por %p57, %p58
      %p60 = scmp.ne.s32.totalorder %s51, %s52
      %p61 = scmp.eq.s32.totalorder %s20, 0
      %p62 = por %p60, %p61
      %p63 = scmp.ne.s32.totalorder %s51, %s52
      %p64 = scmp.eq.s32.totalorder %s21, 1
      %p65 = por %p63, %p64
      %p67 = scmp.ne.s32.totalorder %s52, %s66
      %p68 = scmp.eq.s32.totalorder %s21, 0
      %p69 = por %p67, %p68
      %s71 = sadd.s32 %s70, 1
      %p74 = scmp.eq.s32.totalorder %s15, 1
      %p75 = scmp.ne.s32.totalorder %s70, %s72
      %p76 = scmp.eq.s32.totalorder %s15, 0
      %p77 = por %p75, %p76
      %p78 = scmp.ne.s32.totalorder %s70, %s72
      %p79 = scmp.eq.s32.totalorder %s20, 1
      %p80 = por %p78, %p79
      %p81 = scmp.ne.s32.totalorder %s72, %s73
      %p82 = scmp.eq.s32.totalorder %s20, 0
      %p83 = por %p81, %p82
      %p84 = scmp.ne.s32.totalorder %s72, %s73
      %p85 = scmp.eq.s32.totalorder %s21, 1
      %p86 = por %p84, %p85
      %p88 = scmp.ne.s32.totalorder %s73, %s87
      %p89 = scmp.eq.s32.totalorder %s21, 0
      %p90 = por %p88, %p89
      %s91 = ssub.s32 %s15, %s22
      %p92 = scmp.eq.s32.totalorder %s91, 0
      %s94 = sadd.s32 %s93, 1
      %s95 = scalar_select %p92, %s93, %s94
      %p98 = pneg %p92
      %p99 = scmp.eq.s32.totalorder %s15, 1
      %p100 = por %p98, %p99
      %p101 = scmp.ne.s32.totalorder %s93, %s96
      %p102 = scmp.eq.s32.totalorder %s15, 0
      %p103 = por %p101, %p102
      %p104 = scmp.ne.s32.totalorder %s93, %s96
      %p105 = scmp.eq.s32.totalorder %s20, 1
      %p106 = por %p104, %p105
      %p107 = scmp.ne.s32.totalorder %s96, %s97
      %p108 = scmp.eq.s32.totalorder %s20, 0
      %p109 = por %p107, %p108
      %p110 = scmp.ne.s32.totalorder %s96, %s97
      %p111 = scmp.eq.s32.totalorder %s21, 1
      %p112 = por %p110, %p111
      %p114 = scmp.ne.s32.totalorder %s97, %s113
      %p115 = scmp.eq.s32.totalorder %s21, 0
      %p116 = por %p114, %p115
      %p117 = scmp.le.s32.totalorder 1, %s15
      %p118 = scmp.lt.s32.totalorder %s15, 3
      %p119 = pnand %p117, %p118
      %p120 = pneg %p119
      // Predicated region
      $region9: #{tpu_custom_call.1} parent=5 // pred_check
        _
      $region10: #{tpu_custom_call.1} parent=5 // pred_check_branch
        %122 = sbr.rel (%p119) target = $region12
      $region11: #{tpu_custom_call.1} parent=5 // pred_region
        %s123 = ssub.s32 %s15, 1
        // Predicated region
        $region13: #{tpu_custom_call.1} parent=11 // pred_check
          %p124 = pneg %p62
        $region14: #{tpu_custom_call.1} parent=11 // pred_check_branch
          %126 = sbr.rel (%p124) target = $region16
        $region15: #{tpu_custom_call.1} parent=11 // pred_region
          _
        $region16: #{tpu_custom_call.1} parent=11 // pred_fallthru
          _
        // Predicated region
        $region17: #{tpu_custom_call.1} parent=11 // pred_check
          %p127 = pneg %p83
        $region18: #{tpu_custom_call.1} parent=11 // pred_check_branch
          %129 = sbr.rel (%p127) target = $region20
        $region19: #{tpu_custom_call.1} parent=11 // pred_region
          _
        $region20: #{tpu_custom_call.1} parent=11 // pred_fallthru
          _
      $region12: #{tpu_custom_call.1} parent=5 // pred_fallthru
        _
      %p130 = scmp.lt.s32.totalorder %s15, 2
      // Predicated region
      $region21: #{tpu_custom_call.1} parent=5 // pred_check
        %p131 = pneg %p130
      $region22: #{tpu_custom_call.1} parent=5 // pred_check_branch
        %133 = sbr.rel (%p131) target = $region24
      $region23: #{tpu_custom_call.1} parent=5 // pred_region
        // Predicated region
        $region25: #{tpu_custom_call.1} parent=23 // pred_check
          %p134 = pneg %p35
        $region26: #{tpu_custom_call.1} parent=23 // pred_check_branch
          %136 = sbr.rel (%p134) target = $region28
        $region27: #{tpu_custom_call.1} parent=23 // pred_region
          %s137 = sand.u32 %s25, 1
          %s138 = scalar_lea.sflag [#allocation3], %s137
          %s139 = sand.u32 %s25, 1
          %s140 = smul.addr %s139, 32
          %s141 = scalar_lea.vmem [#allocation2], %s140
          %s142 = smul.u32 2, %s15
          %s144 = ssub.s32 512, 512
          %145 = vsyncadd %s138, %s144
          %s146 = smul.addr %s142, 2
          %s147 = smul.addr %s146, 128
          %s148 = scalar_lea.hbm %s0, %s147
          %s149 = sshll.u32 %s141, 4
          %s150 = int_to_ptr.vmem [resolvable:$true] %s149
          %155 = dma.hbm_to_vmem [thread:$0]  %s148, 512, %s150, %s138, 128, 128, 8
        $region28: #{tpu_custom_call.1} parent=23 // pred_fallthru
          _
      $region24: #{tpu_custom_call.1} parent=5 // pred_fallthru
        _
      %p156 = scmp.le.s32.totalorder 1, %s15
      %p157 = scmp.lt.s32.totalorder %s15, 3
      %p158 = pnand %p156, %p157
      %p159 = pneg %p158
      // Predicated region
      $region29: #{tpu_custom_call.1} parent=5 // pred_check
        _
      $region30: #{tpu_custom_call.1} parent=5 // pred_check_branch
        %161 = sbr.rel (%p158) target = $region32
      $region31: #{tpu_custom_call.1} parent=5 // pred_region
        %s162 = ssub.s32 %s15, 1
        %s163 = sand.u32 %s28, 1
        %s164 = scalar_lea.sflag [#allocation3], %s163
        %s165 = sand.u32 %s28, 1
        %s166 = smul.addr %s165, 32
        %s167 = scalar_lea.vmem [#allocation2], %s166
        // Predicated region
        $region33: #{tpu_custom_call.1} parent=31 // pred_check
          %p168 = pneg %p41
        $region34: #{tpu_custom_call.1} parent=31 // pred_check_branch
          %170 = sbr.rel (%p168) target = $region36
        $region35: #{tpu_custom_call.1} parent=31 // pred_region
          %171 = dma.done %s164, 512
        $region36: #{tpu_custom_call.1} parent=31 // pred_fallthru
          _
        %s172 = sand.u32 %s28, 1
        %s173 = scalar_lea.sflag [#allocation3], %s172
        %s174 = sand.u32 %s28, 1
        %s175 = smul.addr %s174, 32
        %s176 = scalar_lea.vmem [#allocation2], %s175
        %p177 = pneg %p41
        %p178 = pneg %p38
        %p179 = pneg %p62
        %p180 = pneg %p59
        %p181 = pneg %p83
        %p182 = pneg %p80
        %p183 = pneg %p109
        %p184 = pneg %p106
        %s185 = sand.u32 %s96, 1
        %s186 = scalar_lea.sflag [#allocation4], %s185
        %s187 = sand.u32 %s96, 1
        %s188 = smul.addr %s187, 64
        %s189 = scalar_lea.vmem [#allocation5], %s188
        %s190 = smul.u32 2, %s20
        %s191 = smul.u32 2, %s20
        %v192 = vld [vmem:[%s167] sm:$0xff]
        %v193 = vld [vmem:[%s167 + $0x8] sm:$0xff]
        %v194 = vld [vmem:[%s167 + $0x10] sm:$0xff]
        %v195 = vld [vmem:[%s167 + $0x18] sm:$0xff]
        %v196 = vld [vmem:[%s2] sm:$0xff]
        %v197 = vld [vmem:[%s2 + $0x8] sm:$0xff]
        %vm198 = vcmask 130048
        %v200 = vsel %vm198, %v192, 0
        %v203 = vsel %vm198, %v193, 0
        %v206 = vsel %vm198, %v194, 0
        %v209 = vsel %vm198, %v195, 0
        %211 = vmatprep.subr.mxu0 0.0
        %212 = vmatpush1.msra.mxu0 %v196
        %213 = vmatprep.subr.mxu0 0.0
        %214 = vmatpush1.msra.mxu0 %v197
        %215 = vmatprep.subr.mxu0 0.0
        %216 = vmatpush1.msra.mxu0 0.0
        %217 = vmatprep.subr.mxu0 0.0
        %218 = vmatpush1.msra.mxu0 0.0
        %219 = vmatprep.subr.mxu0 0.0
        %220 = vmatpush1.msra.mxu0 0.0
        %221 = vmatprep.subr.mxu0 0.0
        %222 = vmatpush1.msra.mxu0 0.0
        %223 = vmatprep.subr.mxu0 0.0
        %224 = vmatpush1.msra.mxu0 0.0
        %225 = vmatprep.subr.mxu0 0.0
        %226 = vmatpush1.msra.mxu0 0.0
        %227 = vmatprep.subr.mxu0 0.0
        %228 = vmatpush1.msra.mxu0 0.0
        %229 = vmatprep.subr.mxu0 0.0
        %230 = vmatpush1.msra.mxu0 0.0
        %231 = vmatprep.subr.mxu0 0.0
        %232 = vmatpush1.msra.mxu0 0.0
        %233 = vmatprep.subr.mxu0 0.0
        %234 = vmatpush1.msra.mxu0 0.0
        %235 = vmatprep.subr.mxu0 0.0
        %236 = vmatpush1.msra.mxu0 0.0
        %237 = vmatprep.subr.mxu0 0.0
        %238 = vmatpush1.msra.mxu0 0.0
        %239 = vmatprep.subr.mxu0 0.0
        %240 = vmatpush1.msra.mxu0 0.0
        %241 = vmatprep.subr.mxu0 0.0
        %242 = vmatpush1.msra.mxu0 0.0
        %243 = vmatprep.subr.mxu0 0.0
        %244 = vmatpush1.msra.mxu0 0.0
        %245 = vmatprep.subr.mxu0 0.0
        %246 = vmatpush1.msra.mxu0 0.0
        %247 = vmatprep.subr.mxu0 0.0
        %248 = vmatpush1.msra.mxu0 0.0
        %249 = vmatprep.subr.mxu0 0.0
        %250 = vmatpush1.msra.mxu0 0.0
        %251 = vmatprep.subr.mxu0 0.0
        %252 = vmatpush1.msra.mxu0 0.0
        %253 = vmatprep.subr.mxu0 0.0
        %254 = vmatpush1.msra.mxu0 0.0
        %255 = vmatprep.subr.mxu0 0.0
        %256 = vmatpush1.msra.mxu0 0.0
        %257 = vmatprep.subr.mxu0 0.0
        %258 = vmatpush1.msra.mxu0 0.0
        %259 = vmatprep.subr.mxu0 0.0
        %260 = vmatpush1.msra.mxu0 0.0
        %261 = vmatprep.subr.mxu0 0.0
        %262 = vmatpush1.msra.mxu0 0.0
        %263 = vmatprep.subr.mxu0 0.0
        %264 = vmatpush1.msra.mxu0 0.0
        %265 = vmatprep.subr.mxu0 0.0
        %266 = vmatpush1.msra.mxu0 0.0
        %267 = vmatprep.subr.mxu0 0.0
        %268 = vmatpush1.msra.mxu0 0.0
        %269 = vmatprep.subr.mxu0 0.0
        %270 = vmatpush1.msra.mxu0 0.0
        %271 = vmatprep.subr.mxu0 0.0
        %272 = vmatpush1.msra.mxu0 0.0
        %273 = vmatprep.subr.mxu0 0.0
        %274 = vmatpush1.msra.mxu0 0.0
        %275 = vmatprep.mubr.f32.mxu0 0.0
        %276 = vmatmul.mubr.f32.gmra.mrb[0].mxu0 %v200
        %v277 = vpop.f32.mrb[0].mxu0
        %v278 = vadd.f32 0.0, %v277
        %v279 = vpop.f32.mrb[0].mxu0
        %280 = vmatprep.mubr.f32.mxu0 0.0
        %281 = vmatmul.mubr.f32.gmra.mrb[0].mxu0 %v203
        %v282 = vpop.f32.mrb[0].mxu0
        %v283 = vadd.f32 0.0, %v282
        %v284 = vpop.f32.mrb[0].mxu0
        %285 = vmatprep.mubr.f32.mxu0 0.0
        %286 = vmatmul.mubr.f32.gmra.mrb[0].mxu0 %v206
        %v287 = vpop.f32.mrb[0].mxu0
        %v288 = vadd.f32 0.0, %v287
        %v289 = vpop.f32.mrb[0].mxu0
        %290 = vmatprep.mubr.f32.mxu0 0.0
        %291 = vmatmul.mubr.f32.gmra.mrb[0].mxu0 %v209
        %v292 = vpop.f32.mrb[0].mxu0
        %v293 = vadd.f32 0.0, %v292
        %v294 = vpop.f32.mrb[0].mxu0
        %295 = vdwg.mxu0
        %v296 = vld [vmem:[%s1] sm:$0xff]
        %v297 = vld [vmem:[%s1 + $0x8] sm:$0xff]
        %v298 = vld [vmem:[%s1 + $0x10] sm:$0xff]
        %v299 = vld [vmem:[%s1 + $0x18] sm:$0xff]
        %v301 = vsel %vm198, %v296, 0
        %v304 = vsel %vm198, %v297, 0
        %v307 = vsel %vm198, %v298, 0
        %v310 = vsel %vm198, %v299, 0
        %312 = vmatprep.subr.mxu0 0.0
        %313 = vmatpush1.msra.mxu0 %v278
        %314 = vmatprep.subr.mxu0 0.0
        %315 = vmatpush1.msra.mxu0 %v283
        %316 = vmatprep.subr.mxu0 0.0
        %317 = vmatpush1.msra.mxu0 0.0
        %318 = vmatprep.subr.mxu0 0.0
        %319 = vmatpush1.msra.mxu0 0.0
        %320 = vmatprep.subr.mxu0 0.0
        %321 = vmatpush1.msra.mxu0 0.0
        %322 = vmatprep.subr.mxu0 0.0
        %323 = vmatpush1.msra.mxu0 0.0
        %324 = vmatprep.subr.mxu0 0.0
        %325 = vmatpush1.msra.mxu0 0.0
        %326 = vmatprep.subr.mxu0 0.0
        %327 = vmatpush1.msra.mxu0 0.0
        %328 = vmatprep.subr.mxu0 0.0
        %329 = vmatpush1.msra.mxu0 0.0
        %330 = vmatprep.subr.mxu0 0.0
        %331 = vmatpush1.msra.mxu0 0.0
        %332 = vmatprep.subr.mxu0 0.0
        %333 = vmatpush1.msra.mxu0 0.0
        %334 = vmatprep.subr.mxu0 0.0
        %335 = vmatpush1.msra.mxu0 0.0
        %336 = vmatprep.subr.mxu0 0.0
        %337 = vmatpush1.msra.mxu0 0.0
        %338 = vmatprep.subr.mxu0 0.0
        %339 = vmatpush1.msra.mxu0 0.0
        %340 = vmatprep.subr.mxu0 0.0
        %341 = vmatpush1.msra.mxu0 0.0
        %342 = vmatprep.subr.mxu0 0.0
        %343 = vmatpush1.msra.mxu0 0.0
        %344 = vmatprep.subr.mxu0 0.0
        %345 = vmatpush1.msra.mxu0 0.0
        %346 = vmatprep.subr.mxu0 0.0
        %347 = vmatpush1.msra.mxu0 0.0
        %348 = vmatprep.subr.mxu0 0.0
        %349 = vmatpush1.msra.mxu0 0.0
        %350 = vmatprep.subr.mxu0 0.0
        %351 = vmatpush1.msra.mxu0 0.0
        %352 = vmatprep.subr.mxu0 0.0
        %353 = vmatpush1.msra.mxu0 0.0
        %354 = vmatprep.subr.mxu0 0.0
        %355 = vmatpush1.msra.mxu0 0.0
        %356 = vmatprep.subr.mxu0 0.0
        %357 = vmatpush1.msra.mxu0 0.0
        %358 = vmatprep.subr.mxu0 0.0
        %359 = vmatpush1.msra.mxu0 0.0
        %360 = vmatprep.subr.mxu0 0.0
        %361 = vmatpush1.msra.mxu0 0.0
        %362 = vmatprep.subr.mxu0 0.0
        %363 = vmatpush1.msra.mxu0 0.0
        %364 = vmatprep.subr.mxu0 0.0
        %365 = vmatpush1.msra.mxu0 0.0
        %366 = vmatprep.subr.mxu0 0.0
        %367 = vmatpush1.msra.mxu0 0.0
        %368 = vmatprep.subr.mxu0 0.0
        %369 = vmatpush1.msra.mxu0 0.0
        %370 = vmatprep.subr.mxu0 0.0
        %371 = vmatpush1.msra.mxu0 0.0
        %372 = vmatprep.subr.mxu0 0.0
        %373 = vmatpush1.msra.mxu0 0.0
        %374 = vmatprep.subr.mxu0 0.0
        %375 = vmatpush1.msra.mxu0 0.0
        %376 = vmatprep.mubr.f32.mxu0 0.0
        %377 = vmatmul.mubr.f32.gmra.mrb[0].mxu0 %v301
        %v378 = vpop.f32.mrb[0].mxu0
        %v379 = vadd.f32 0.0, %v378
        %v380 = vpop.f32.mrb[0].mxu0
        %381 = vmatprep.mubr.f32.mxu0 0.0
        %382 = vmatmul.mubr.f32.gmra.mrb[0].mxu0 %v304
        %v383 = vpop.f32.mrb[0].mxu0
        %v384 = vadd.f32 0.0, %v383
        %v385 = vpop.f32.mrb[0].mxu0
        %386 = vmatprep.mubr.f32.mxu0 0.0
        %387 = vmatmul.mubr.f32.gmra.mrb[0].mxu0 %v307
        %v388 = vpop.f32.mrb[0].mxu0
        %v389 = vadd.f32 0.0, %v388
        %v390 = vpop.f32.mrb[0].mxu0
        %391 = vmatprep.mubr.f32.mxu0 0.0
        %392 = vmatmul.mubr.f32.gmra.mrb[0].mxu0 %v310
        %v393 = vpop.f32.mrb[0].mxu0
        %v394 = vadd.f32 0.0, %v393
        %v395 = vpop.f32.mrb[0].mxu0
        %396 = vdwg.mxu0
        %397 = vmatprep.subr.mxu0 0.0
        %398 = vmatpush1.msra.mxu0 %v288
        %399 = vmatprep.subr.mxu0 0.0
        %400 = vmatpush1.msra.mxu0 %v293
        %401 = vmatprep.subr.mxu0 0.0
        %402 = vmatpush1.msra.mxu0 0.0
        %403 = vmatprep.subr.mxu0 0.0
        %404 = vmatpush1.msra.mxu0 0.0
        %405 = vmatprep.subr.mxu0 0.0
        %406 = vmatpush1.msra.mxu0 0.0
        %407 = vmatprep.subr.mxu0 0.0
        %408 = vmatpush1.msra.mxu0 0.0
        %409 = vmatprep.subr.mxu0 0.0
        %410 = vmatpush1.msra.mxu0 0.0
        %411 = vmatprep.subr.mxu0 0.0
        %412 = vmatpush1.msra.mxu0 0.0
        %413 = vmatprep.subr.mxu0 0.0
        %414 = vmatpush1.msra.mxu0 0.0
        %415 = vmatprep.subr.mxu0 0.0
        %416 = vmatpush1.msra.mxu0 0.0
        %417 = vmatprep.subr.mxu0 0.0
        %418 = vmatpush1.msra.mxu0 0.0
        %419 = vmatprep.subr.mxu0 0.0
        %420 = vmatpush1.msra.mxu0 0.0
        %421 = vmatprep.subr.mxu0 0.0
        %422 = vmatpush1.msra.mxu0 0.0
        %423 = vmatprep.subr.mxu0 0.0
        %424 = vmatpush1.msra.mxu0 0.0
        %425 = vmatprep.subr.mxu0 0.0
        %426 = vmatpush1.msra.mxu0 0.0
        %427 = vmatprep.subr.mxu0 0.0
        %428 = vmatpush1.msra.mxu0 0.0
        %429 = vmatprep.subr.mxu0 0.0
        %430 = vmatpush1.msra.mxu0 0.0
        %431 = vmatprep.subr.mxu0 0.0
        %432 = vmatpush1.msra.mxu0 0.0
        %433 = vmatprep.subr.mxu0 0.0
        %434 = vmatpush1.msra.mxu0 0.0
        %435 = vmatprep.subr.mxu0 0.0
        %436 = vmatpush1.msra.mxu0 0.0
        %437 = vmatprep.subr.mxu0 0.0
        %438 = vmatpush1.msra.mxu0 0.0
        %439 = vmatprep.subr.mxu0 0.0
        %440 = vmatpush1.msra.mxu0 0.0
        %441 = vmatprep.subr.mxu0 0.0
        %442 = vmatpush1.msra.mxu0 0.0
        %443 = vmatprep.subr.mxu0 0.0
        %444 = vmatpush1.msra.mxu0 0.0
        %445 = vmatprep.subr.mxu0 0.0
        %446 = vmatpush1.msra.mxu0 0.0
        %447 = vmatprep.subr.mxu0 0.0
        %448 = vmatpush1.msra.mxu0 0.0
        %449 = vmatprep.subr.mxu0 0.0
        %450 = vmatpush1.msra.mxu0 0.0
        %451 = vmatprep.subr.mxu0 0.0
        %452 = vmatpush1.msra.mxu0 0.0
        %453 = vmatprep.subr.mxu0 0.0
        %454 = vmatpush1.msra.mxu0 0.0
        %455 = vmatprep.subr.mxu0 0.0
        %456 = vmatpush1.msra.mxu0 0.0
        %457 = vmatprep.subr.mxu0 0.0
        %458 = vmatpush1.msra.mxu0 0.0
        %459 = vmatprep.subr.mxu0 0.0
        %460 = vmatpush1.msra.mxu0 0.0
        %461 = vmatprep.mubr.f32.mxu0 0.0
        %462 = vmatmul.mubr.f32.gmra.mrb[0].mxu0 %v301
        %v463 = vpop.f32.mrb[0].mxu0
        %v464 = vadd.f32 0.0, %v463
        %v465 = vpop.f32.mrb[0].mxu0
        %466 = vmatprep.mubr.f32.mxu0 0.0
        %467 = vmatmul.mubr.f32.gmra.mrb[0].mxu0 %v304
        %v468 = vpop.f32.mrb[0].mxu0
        %v469 = vadd.f32 0.0, %v468
        %v470 = vpop.f32.mrb[0].mxu0
        %471 = vmatprep.mubr.f32.mxu0 0.0
        %472 = vmatmul.mubr.f32.gmra.mrb[0].mxu0 %v307
        %v473 = vpop.f32.mrb[0].mxu0
        %v474 = vadd.f32 0.0, %v473
        %v475 = vpop.f32.mrb[0].mxu0
        %476 = vmatprep.mubr.f32.mxu0 0.0
        %477 = vmatmul.mubr.f32.gmra.mrb[0].mxu0 %v310
        %v478 = vpop.f32.mrb[0].mxu0
        %v479 = vadd.f32 0.0, %v478
        %v480 = vpop.f32.mrb[0].mxu0
        %481 = vdwg.mxu0
        %vm482 = vcmask 261120
        %483 = vst.msk [vmem:[%s189] sm:$0xff] %vm482, %v379
        %484 = vst.msk [vmem:[%s189 + $0x8] sm:$0xff] %vm482, %v384
        %485 = vst.msk [vmem:[%s189 + $0x10] sm:$0xff] %vm482, %v389
        %486 = vst.msk [vmem:[%s189 + $0x18] sm:$0xff] %vm482, %v394
        %487 = vst.msk [vmem:[%s189 + $0x20] sm:$0xff] %vm482, %v464
        %488 = vst.msk [vmem:[%s189 + $0x28] sm:$0xff] %vm482, %v469
        %489 = vst.msk [vmem:[%s189 + $0x30] sm:$0xff] %vm482, %v474
        %490 = vst.msk [vmem:[%s189 + $0x38] sm:$0xff] %vm482, %v479
        %s491 = sand.u32 %s96, 1
        %s492 = scalar_lea.sflag [#allocation4], %s491
        %s493 = sand.u32 %s96, 1
        %s494 = smul.addr %s493, 64
        %s495 = scalar_lea.vmem [#allocation5], %s494
        // Predicated region
        $region37: #{tpu_custom_call.1} parent=31 // pred_check
          %p496 = pneg %p106
        $region38: #{tpu_custom_call.1} parent=31 // pred_check_branch
          %498 = sbr.rel (%p496) target = $region40
        $region39: #{tpu_custom_call.1} parent=31 // pred_region
          %s499 = smul.u32 2, %s20
          %s501 = ssub.s32 1024, 1024
          %502 = vsyncadd %s492, %s501
          %s503 = smul.addr %s499, 4
          %s504 = smul.addr %s503, 128
          %s505 = scalar_lea.hbm %s3, %s504
          %s506 = sshll.u32 %s495, 4
          %s507 = int_to_ptr.vmem [resolvable:$true] %s506
          %512 = dma.vmem_to_hbm [thread:$0]  %s507, 1024, %s505, %s492, 128, 128, 8
        $region40: #{tpu_custom_call.1} parent=31 // pred_fallthru
          _
      $region32: #{tpu_custom_call.1} parent=5 // pred_fallthru
        _
      %p513 = scmp.le.s32.totalorder 2, %s15
      // Predicated region
      $region41: #{tpu_custom_call.1} parent=5 // pred_check
        %p514 = pneg %p513
      $region42: #{tpu_custom_call.1} parent=5 // pred_check_branch
        %516 = sbr.rel (%p514) target = $region44
      $region43: #{tpu_custom_call.1} parent=5 // pred_region
        %s517 = ssub.s32 %s15, 2
        // Predicated region
        $region45: #{tpu_custom_call.1} parent=43 // pred_check
          %p518 = pneg %p112
        $region46: #{tpu_custom_call.1} parent=43 // pred_check_branch
          %520 = sbr.rel (%p518) target = $region48
        $region47: #{tpu_custom_call.1} parent=43 // pred_region
          %s521 = sand.u32 %s97, 1
          %s522 = scalar_lea.sflag [#allocation4], %s521
          %s523 = sand.u32 %s97, 1
          %s524 = smul.addr %s523, 64
          %s525 = scalar_lea.vmem [#allocation5], %s524
          %526 = dma.done %s522, 1024
        $region48: #{tpu_custom_call.1} parent=43 // pred_fallthru
          _
      $region44: #{tpu_custom_call.1} parent=5 // pred_fallthru
        _
    $region6: #{tpu_custom_call.1} parent=1 // loop_footer
      %s19 = sadd.s32 1, %s15
    $region7: #{tpu_custom_call.1} parent=1 // loop_footer_branch
      %14 = sbr.rel target = $region3
    $region8: #{tpu_custom_call.1} parent=1 // loop_exit
      _
    %527 = vsyncpa [#allocation3], 1
    %s528 = scalar_lea.sflag [#allocation3], 1
    %529 = vsyncpa %s528, 1
    %530 = vsyncpa [#allocation4], 1
    %s531 = scalar_lea.sflag [#allocation4], 1
    %532 = vsyncpa %s531, 1

// kernel: tpu_custom_call.1
$region0: #{tpu_custom_call.1}
  #allocation0 [shape = 'u32[]', space=smem, size = 0x4, offset = 0x4, fixed_abs, tag = 'smem constant byte address 0x4 - core index']
  #allocation1 [shape = 'u32[144,128]{1,0:T(1,128)}', space=vmem, size = 0x12000, scoped, tag = 'internal scratch']
  %s0 = inlined_call_operand.hbm [shape: f32[4,16,16], index: 0, kind: input, shape index: {}]
  %s1 = inlined_call_operand.vmem [shape: f32[32,16], index: 1, kind: input, shape index: {}]
  %s2 = inlined_call_operand.vmem [shape: f32[16,32], index: 2, kind: input, shape index: {}]
  %s3 = inlined_call_operand.hbm [shape: f32[4,32,32], index: 3, kind: output, shape index: {}]
  %s4 = sld [smem:[#allocation0]]
  $region49: #{tpu_custom_call.1} parent=0
    _
  %s6 = ssub.s32 1, %s4
  %s7 = scalar_select 0, %s6, %s4
  $region1: #{tpu_custom_call.1} parent=0
    #allocation2 [shape = 'u8[32768]{0}', space=vmem, size = 0x8000, scoped, tag = 'input window, operand 0']
    #allocation3 [shape = 's32[2]{0}', space=sflag, size = 0x8, scoped, tag = 'scoped memory for tpu_custom_call.1']
    #allocation4 [shape = 's32[2]{0}', space=sflag, size = 0x8, scoped, tag = 'scoped memory for tpu_custom_call.1']
    #allocation5 [shape = 'u8[65536]{0}', space=vmem, size = 0x10000, scoped, tag = 'output window, operand 0']
    %8 = vsyncpa [#allocation3], 0
    %s9 = scalar_lea.sflag [#allocation3], 1
    %10 = vsyncpa %s9, 0
    %11 = vsyncpa [#allocation4], 0
    %s12 = scalar_lea.sflag [#allocation4], 1
    %13 = vsyncpa %s12, 0
    loop: start=0, step=1, limit=4
    $region2: #{tpu_custom_call.1} parent=1 // loop_pre_header
      _
    $region3: #{tpu_custom_call.1} parent=1 // loop_header
      %s15 = sphi 0, %s19
      %p16 = scmp.ge.s32.totalorder %s15, 4
      %s25 = sphi 0, %s27
      %s28 = sphi 0, %s25
      %s29 = sphi 0, %s28
      %s45 = sphi 0, %s29
      %s49 = sphi 0, %s49
      %s51 = sphi 0, %s49
      %s52 = sphi 0, %s51
      %s66 = sphi 0, %s52
      %s70 = sphi 0, %s70
      %s72 = sphi 0, %s70
      %s73 = sphi 0, %s72
      %s87 = sphi 0, %s73
      %s93 = sphi 0, %s95
      %s96 = sphi 0, %s93
      %s97 = sphi 0, %s96
      %s113 = sphi 0, %s97
    $region4: #{tpu_custom_call.1} parent=1 // loop_header_branch
      %18 = sbr.rel (%p16) target = $region8
    $region5: #{tpu_custom_call.1} parent=1 // loop_body
      %s20 = ssub.s32 %s15, 1
      %s21 = ssub.s32 %s15, 2
      %s22 = sadd.s32 %s15, 1
      %s23 = ssub.s32 %s15, %s22
      %p24 = scmp.eq.s32.totalorder %s23, 0
      %s26 = sadd.s32 %s25, 1
      %s27 = scalar_select %p24, %s25, %s26
      %p30 = pneg %p24
      %p31 = scmp.eq.s32.totalorder %s15, 1
      %p32 = por %p30, %p31
      %p33 = scmp.ne.s32.totalorder %s25, %s28
      %p34 = scmp.eq.s32.totalorder %s15, 0
      %p35 = por %p33, %p34
      %p36 = scmp.ne.s32.totalorder %s25, %s28
      %p37 = scmp.eq.s32.totalorder %s20, 1
      %p38 = por %p36, %p37
      %p39 = scmp.ne.s32.totalorder %s28, %s29
      %p40 = scmp.eq.s32.totalorder %s20, 0
      %p41 = por %p39, %p40
      %p42 = scmp.ne.s32.totalorder %s28, %s29
      %p43 = scmp.eq.s32.totalorder %s21, 1
      %p44 = por %p42, %p43
      %p46 = scmp.ne.s32.totalorder %s29, %s45
      %p47 = scmp.eq.s32.totalorder %s21, 0
      %p48 = por %p46, %p47
      %s50 = sadd.s32 %s49, 1
      %p53 = scmp.eq.s32.totalorder %s15, 1
      %p54 = scmp.ne.s32.totalorder %s49, %s51
      %p55 = scmp.eq.s32.totalorder %s15, 0
      %p56 = por %p54, %p55
      %p57 = scmp.ne.s32.totalorder %s49, %s51
      %p58 = scmp.eq.s32.totalorder %s20, 1
      %p59 = por %p57, %p58
      %p60 = scmp.ne.s32.totalorder %s51, %s52
      %p61 = scmp.eq.s32.totalorder %s20, 0
      %p62 = por %p60, %p61
      %p63 = scmp.ne.s32.totalorder %s51, %s52
      %p64 = scmp.eq.s32.totalorder %s21, 1
      %p65 = por %p63, %p64
      %p67 = scmp.ne.s32.totalorder %s52, %s66
      %p68 = scmp.eq.s32.totalorder %s21, 0
      %p69 = por %p67, %p68
      %s71 = sadd.s32 %s70, 1
      %p74 = scmp.eq.s32.totalorder %s15, 1
      %p75 = scmp.ne.s32.totalorder %s70, %s72
      %p76 = scmp.eq.s32.totalorder %s15, 0
      %p77 = por %p75, %p76
      %p78 = scmp.ne.s32.totalorder %s70, %s72
      %p79 = scmp.eq.s32.totalorder %s20, 1
      %p80 = por %p78, %p79
      %p81 = scmp.ne.s32.totalorder %s72, %s73
      %p82 = scmp.eq.s32.totalorder %s20, 0
      %p83 = por %p81, %p82
      %p84 = scmp.ne.s32.totalorder %s72, %s73
      %p85 = scmp.eq.s32.totalorder %s21, 1
      %p86 = por %p84, %p85
      %p88 = scmp.ne.s32.totalorder %s73, %s87
      %p89 = scmp.eq.s32.totalorder %s21, 0
      %p90 = por %p88, %p89
      %s91 = ssub.s32 %s15, %s22
      %p92 = scmp.eq.s32.totalorder %s91, 0
      %s94 = sadd.s32 %s93, 1
      %s95 = scalar_select %p92, %s93, %s94
      %p98 = pneg %p92
      %p99 = scmp.eq.s32.totalorder %s15, 1
      %p100 = por %p98, %p99
      %p101 = scmp.ne.s32.totalorder %s93, %s96
      %p102 = scmp.eq.s32.totalorder %s15, 0
      %p103 = por %p101, %p102
      %p104 = scmp.ne.s32.totalorder %s93, %s96
      %p105 = scmp.eq.s32.totalorder %s20, 1
      %p106 = por %p104, %p105
      %p107 = scmp.ne.s32.totalorder %s96, %s97
      %p108 = scmp.eq.s32.totalorder %s20, 0
      %p109 = por %p107, %p108
      %p110 = scmp.ne.s32.totalorder %s96, %s97
      %p111 = scmp.eq.s32.totalorder %s21, 1
      %p112 = por %p110, %p111
      %p114 = scmp.ne.s32.totalorder %s97, %s113
      %p115 = scmp.eq.s32.totalorder %s21, 0
      %p116 = por %p114, %p115
      %p117 = scmp.le.s32.totalorder 1, %s15
      %p118 = scmp.lt.s32.totalorder %s15, 3
      %p119 = pnand %p117, %p118
      %p120 = pneg %p119
      // Predicated region
      $region9: #{tpu_custom_call.1} parent=5 // pred_check
        _
      $region10: #{tpu_custom_call.1} parent=5 // pred_check_branch
        %122 = sbr.rel (%p119) target = $region12
      $region11: #{tpu_custom_call.1} parent=5 // pred_region
        %s123 = ssub.s32 %s15, 1
        // Predicated region
        $region13: #{tpu_custom_call.1} parent=11 // pred_check
          %p124 = pneg %p62
        $region14: #{tpu_custom_call.1} parent=11 // pred_check_branch
          %126 = sbr.rel (%p124) target = $region16
        $region15: #{tpu_custom_call.1} parent=11 // pred_region
          _
        $region16: #{tpu_custom_call.1} parent=11 // pred_fallthru
          _
        // Predicated region
        $region17: #{tpu_custom_call.1} parent=11 // pred_check
          %p127 = pneg %p83
        $region18: #{tpu_custom_call.1} parent=11 // pred_check_branch
          %129 = sbr.rel (%p127) target = $region20
        $region19: #{tpu_custom_call.1} parent=11 // pred_region
          _
        $region20: #{tpu_custom_call.1} parent=11 // pred_fallthru
          _
      $region12: #{tpu_custom_call.1} parent=5 // pred_fallthru
        _
      %p130 = scmp.lt.s32.totalorder %s15, 2
      // Predicated region
      $region21: #{tpu_custom_call.1} parent=5 // pred_check
        %p131 = pneg %p130
      $region22: #{tpu_custom_call.1} parent=5 // pred_check_branch
        %133 = sbr.rel (%p131) target = $region24
      $region23: #{tpu_custom_call.1} parent=5 // pred_region
        // Predicated region
        $region25: #{tpu_custom_call.1} parent=23 // pred_check
          %p134 = pneg %p35
        $region26: #{tpu_custom_call.1} parent=23 // pred_check_branch
          %136 = sbr.rel (%p134) target = $region28
        $region27: #{tpu_custom_call.1} parent=23 // pred_region
          %s137 = sand.u32 %s25, 1
          %s138 = scalar_lea.sflag [#allocation3], %s137
          %s139 = sand.u32 %s25, 1
          %s140 = smul.addr %s139, 32
          %s141 = scalar_lea.vmem [#allocation2], %s140
          %s142 = smul.u32 2, %s15
          %s144 = ssub.s32 512, 512
          %145 = vsyncadd %s138, %s144
          %s146 = smul.addr %s142, 2
          %s147 = smul.addr %s146, 128
          %s148 = scalar_lea.hbm %s0, %s147
          %s149 = sshll.u32 %s141, 4
          %s150 = int_to_ptr.vmem [resolvable:$true] %s149
          %155 = dma.hbm_to_vmem [thread:$0]  %s148, 512, %s150, %s138, 128, 128, 8
        $region28: #{tpu_custom_call.1} parent=23 // pred_fallthru
          _
      $region24: #{tpu_custom_call.1} parent=5 // pred_fallthru
        _
      %p156 = scmp.le.s32.totalorder 1, %s15
      %p157 = scmp.lt.s32.totalorder %s15, 3
      %p158 = pnand %p156, %p157
      %p159 = pneg %p158
      // Predicated region
      $region29: #{tpu_custom_call.1} parent=5 // pred_check
        _
      $region30: #{tpu_custom_call.1} parent=5 // pred_check_branch
        %161 = sbr.rel (%p158) target = $region32
      $region31: #{tpu_custom_call.1} parent=5 // pred_region
        %s162 = ssub.s32 %s15, 1
        %s163 = sand.u32 %s28, 1
        %s164 = scalar_lea.sflag [#allocation3], %s163
        %s165 = sand.u32 %s28, 1
        %s166 = smul.addr %s165, 32
        %s167 = scalar_lea.vmem [#allocation2], %s166
        // Predicated region
        $region33: #{tpu_custom_call.1} parent=31 // pred_check
          %p168 = pneg %p41
        $region34: #{tpu_custom_call.1} parent=31 // pred_check_branch
          %170 = sbr.rel (%p168) target = $region36
        $region35: #{tpu_custom_call.1} parent=31 // pred_region
          %171 = dma.done %s164, 512
        $region36: #{tpu_custom_call.1} parent=31 // pred_fallthru
          _
        %s172 = sand.u32 %s28, 1
        %s173 = scalar_lea.sflag [#allocation3], %s172
        %s174 = sand.u32 %s28, 1
        %s175 = smul.addr %s174, 32
        %s176 = scalar_lea.vmem [#allocation2], %s175
        %p177 = pneg %p41
        %p178 = pneg %p38
        %p179 = pneg %p62
        %p180 = pneg %p59
        %p181 = pneg %p83
        %p182 = pneg %p80
        %p183 = pneg %p109
        %p184 = pneg %p106
        %s185 = sand.u32 %s96, 1
        %s186 = scalar_lea.sflag [#allocation4], %s185
        %s187 = sand.u32 %s96, 1
        %s188 = smul.addr %s187, 64
        %s189 = scalar_lea.vmem [#allocation5], %s188
        %s190 = smul.u32 2, %s20
        %s191 = smul.u32 2, %s20
        %v192 = vld [vmem:[%s167] sm:$0xff]
        %v193 = vld [vmem:[%s167 + $0x8] sm:$0xff]
        %v194 = vld [vmem:[%s167 + $0x10] sm:$0xff]
        %v195 = vld [vmem:[%s167 + $0x18] sm:$0xff]
        %v196 = vld [vmem:[%s2] sm:$0xff]
        %v197 = vld [vmem:[%s2 + $0x8] sm:$0xff]
        %vm198 = vcmask 130048
        %v200 = vsel %vm198, %v192, 0
        %v203 = vsel %vm198, %v193, 0
        %v206 = vsel %vm198, %v194, 0
        %v209 = vsel %vm198, %v195, 0
        %211 = vmatprep.subr.mxu0 0.0
        %212 = vmatpush1.msra.mxu0 %v196
        %213 = vmatprep.subr.mxu0 0.0
        %214 = vmatpush1.msra.mxu0 %v197
        %215 = vmatprep.subr.mxu0 0.0
        %216 = vmatpush1.msra.mxu0 0.0
        %217 = vmatprep.subr.mxu0 0.0
        %218 = vmatpush1.msra.mxu0 0.0
        %219 = vmatprep.subr.mxu0 0.0
        %220 = vmatpush1.msra.mxu0 0.0
        %221 = vmatprep.subr.mxu0 0.0
        %222 = vmatpush1.msra.mxu0 0.0
        %223 = vmatprep.subr.mxu0 0.0
        %224 = vmatpush1.msra.mxu0 0.0
        %225 = vmatprep.subr.mxu0 0.0
        %226 = vmatpush1.msra.mxu0 0.0
        %227 = vmatprep.subr.mxu0 0.0
        %228 = vmatpush1.msra.mxu0 0.0
        %229 = vmatprep.subr.mxu0 0.0
        %230 = vmatpush1.msra.mxu0 0.0
        %231 = vmatprep.subr.mxu0 0.0
        %232 = vmatpush1.msra.mxu0 0.0
        %233 = vmatprep.subr.mxu0 0.0
        %234 = vmatpush1.msra.mxu0 0.0
        %235 = vmatprep.subr.mxu0 0.0
        %236 = vmatpush1.msra.mxu0 0.0
        %237 = vmatprep.subr.mxu0 0.0
        %238 = vmatpush1.msra.mxu0 0.0
        %239 = vmatprep.subr.mxu0 0.0
        %240 = vmatpush1.msra.mxu0 0.0
        %241 = vmatprep.subr.mxu0 0.0
        %242 = vmatpush1.msra.mxu0 0.0
        %243 = vmatprep.subr.mxu0 0.0
        %244 = vmatpush1.msra.mxu0 0.0
        %245 = vmatprep.subr.mxu0 0.0
        %246 = vmatpush1.msra.mxu0 0.0
        %247 = vmatprep.subr.mxu0 0.0
        %248 = vmatpush1.msra.mxu0 0.0
        %249 = vmatprep.subr.mxu0 0.0
        %250 = vmatpush1.msra.mxu0 0.0
        %251 = vmatprep.subr.mxu0 0.0
        %252 = vmatpush1.msra.mxu0 0.0
        %253 = vmatprep.subr.mxu0 0.0
        %254 = vmatpush1.msra.mxu0 0.0
        %255 = vmatprep.subr.mxu0 0.0
        %256 = vmatpush1.msra.mxu0 0.0
        %257 = vmatprep.subr.mxu0 0.0
        %258 = vmatpush1.msra.mxu0 0.0
        %259 = vmatprep.subr.mxu0 0.0
        %260 = vmatpush1.msra.mxu0 0.0
        %261 = vmatprep.subr.mxu0 0.0
        %262 = vmatpush1.msra.mxu0 0.0
        %263 = vmatprep.subr.mxu0 0.0
        %264 = vmatpush1.msra.mxu0 0.0
        %265 = vmatprep.subr.mxu0 0.0
        %266 = vmatpush1.msra.mxu0 0.0
        %267 = vmatprep.subr.mxu0 0.0
        %268 = vmatpush1.msra.mxu0 0.0
        %269 = vmatprep.subr.mxu0 0.0
        %270 = vmatpush1.msra.mxu0 0.0
        %271 = vmatprep.subr.mxu0 0.0
        %272 = vmatpush1.msra.mxu0 0.0
        %273 = vmatprep.subr.mxu0 0.0
        %274 = vmatpush1.msra.mxu0 0.0
        %275 = vmatprep.mubr.f32.mxu0 0.0
        %276 = vmatmul.mubr.f32.gmra.mrb[0].mxu0 %v200
        %v277 = vpop.f32.mrb[0].mxu0
        %v278 = vadd.f32 0.0, %v277
        %v279 = vpop.f32.mrb[0].mxu0
        %280 = vmatprep.mubr.f32.mxu0 0.0
        %281 = vmatmul.mubr.f32.gmra.mrb[0].mxu0 %v203
        %v282 = vpop.f32.mrb[0].mxu0
        %v283 = vadd.f32 0.0, %v282
        %v284 = vpop.f32.mrb[0].mxu0
        %285 = vmatprep.mubr.f32.mxu0 0.0
        %286 = vmatmul.mubr.f32.gmra.mrb[0].mxu0 %v206
        %v287 = vpop.f32.mrb[0].mxu0
        %v288 = vadd.f32 0.0, %v287
        %v289 = vpop.f32.mrb[0].mxu0
        %290 = vmatprep.mubr.f32.mxu0 0.0
        %291 = vmatmul.mubr.f32.gmra.mrb[0].mxu0 %v209
        %v292 = vpop.f32.mrb[0].mxu0
        %v293 = vadd.f32 0.0, %v292
        %v294 = vpop.f32.mrb[0].mxu0
        %295 = vdwg.mxu0
        %v296 = vld [vmem:[%s1] sm:$0xff]
        %v297 = vld [vmem:[%s1 + $0x8] sm:$0xff]
        %v298 = vld [vmem:[%s1 + $0x10] sm:$0xff]
        %v299 = vld [vmem:[%s1 + $0x18] sm:$0xff]
        %v301 = vsel %vm198, %v296, 0
        %v304 = vsel %vm198, %v297, 0
        %v307 = vsel %vm198, %v298, 0
        %v310 = vsel %vm198, %v299, 0
        %312 = vmatprep.subr.mxu0 0.0
        %313 = vmatpush1.msra.mxu0 %v278
        %314 = vmatprep.subr.mxu0 0.0
        %315 = vmatpush1.msra.mxu0 %v283
        %316 = vmatprep.subr.mxu0 0.0
        %317 = vmatpush1.msra.mxu0 0.0
        %318 = vmatprep.subr.mxu0 0.0
        %319 = vmatpush1.msra.mxu0 0.0
        %320 = vmatprep.subr.mxu0 0.0
        %321 = vmatpush1.msra.mxu0 0.0
        %322 = vmatprep.subr.mxu0 0.0
        %323 = vmatpush1.msra.mxu0 0.0
        %324 = vmatprep.subr.mxu0 0.0
        %325 = vmatpush1.msra.mxu0 0.0
        %326 = vmatprep.subr.mxu0 0.0
        %327 = vmatpush1.msra.mxu0 0.0
        %328 = vmatprep.subr.mxu0 0.0
        %329 = vmatpush1.msra.mxu0 0.0
        %330 = vmatprep.subr.mxu0 0.0
        %331 = vmatpush1.msra.mxu0 0.0
        %332 = vmatprep.subr.mxu0 0.0
        %333 = vmatpush1.msra.mxu0 0.0
        %334 = vmatprep.subr.mxu0 0.0
        %335 = vmatpush1.msra.mxu0 0.0
        %336 = vmatprep.subr.mxu0 0.0
        %337 = vmatpush1.msra.mxu0 0.0
        %338 = vmatprep.subr.mxu0 0.0
        %339 = vmatpush1.msra.mxu0 0.0
        %340 = vmatprep.subr.mxu0 0.0
        %341 = vmatpush1.msra.mxu0 0.0
        %342 = vmatprep.subr.mxu0 0.0
        %343 = vmatpush1.msra.mxu0 0.0
        %344 = vmatprep.subr.mxu0 0.0
        %345 = vmatpush1.msra.mxu0 0.0
        %346 = vmatprep.subr.mxu0 0.0
        %347 = vmatpush1.msra.mxu0 0.0
        %348 = vmatprep.subr.mxu0 0.0
        %349 = vmatpush1.msra.mxu0 0.0
        %350 = vmatprep.subr.mxu0 0.0
        %351 = vmatpush1.msra.mxu0 0.0
        %352 = vmatprep.subr.mxu0 0.0
        %353 = vmatpush1.msra.mxu0 0.0
        %354 = vmatprep.subr.mxu0 0.0
        %355 = vmatpush1.msra.mxu0 0.0
        %356 = vmatprep.subr.mxu0 0.0
        %357 = vmatpush1.msra.mxu0 0.0
        %358 = vmatprep.subr.mxu0 0.0
        %359 = vmatpush1.msra.mxu0 0.0
        %360 = vmatprep.subr.mxu0 0.0
        %361 = vmatpush1.msra.mxu0 0.0
        %362 = vmatprep.subr.mxu0 0.0
        %363 = vmatpush1.msra.mxu0 0.0
        %364 = vmatprep.subr.mxu0 0.0
        %365 = vmatpush1.msra.mxu0 0.0
        %366 = vmatprep.subr.mxu0 0.0
        %367 = vmatpush1.msra.mxu0 0.0
        %368 = vmatprep.subr.mxu0 0.0
        %369 = vmatpush1.msra.mxu0 0.0
        %370 = vmatprep.subr.mxu0 0.0
        %371 = vmatpush1.msra.mxu0 0.0
        %372 = vmatprep.subr.mxu0 0.0
        %373 = vmatpush1.msra.mxu0 0.0
        %374 = vmatprep.subr.mxu0 0.0
        %375 = vmatpush1.msra.mxu0 0.0
        %376 = vmatprep.mubr.f32.mxu0 0.0
        %377 = vmatmul.mubr.f32.gmra.mrb[0].mxu0 %v301
        %v378 = vpop.f32.mrb[0].mxu0
        %v379 = vadd.f32 0.0, %v378
        %v380 = vpop.f32.mrb[0].mxu0
        %381 = vmatprep.mubr.f32.mxu0 0.0
        %382 = vmatmul.mubr.f32.gmra.mrb[0].mxu0 %v304
        %v383 = vpop.f32.mrb[0].mxu0
        %v384 = vadd.f32 0.0, %v383
        %v385 = vpop.f32.mrb[0].mxu0
        %386 = vmatprep.mubr.f32.mxu0 0.0
        %387 = vmatmul.mubr.f32.gmra.mrb[0].mxu0 %v307
        %v388 = vpop.f32.mrb[0].mxu0
        %v389 = vadd.f32 0.0, %v388
        %v390 = vpop.f32.mrb[0].mxu0
        %391 = vmatprep.mubr.f32.mxu0 0.0
        %392 = vmatmul.mubr.f32.gmra.mrb[0].mxu0 %v310
        %v393 = vpop.f32.mrb[0].mxu0
        %v394 = vadd.f32 0.0, %v393
        %v395 = vpop.f32.mrb[0].mxu0
        %396 = vdwg.mxu0
        %397 = vmatprep.subr.mxu0 0.0
        %398 = vmatpush1.msra.mxu0 %v288
        %399 = vmatprep.subr.mxu0 0.0
        %400 = vmatpush1.msra.mxu0 %v293
        %401 = vmatprep.subr.mxu0 0.0
        %402 = vmatpush1.msra.mxu0 0.0
        %403 = vmatprep.subr.mxu0 0.0
        %404 = vmatpush1.msra.mxu0 0.0
        %405 = vmatprep.subr.mxu0 0.0
        %406 = vmatpush1.msra.mxu0 0.0
        %407 = vmatprep.subr.mxu0 0.0
        %408 = vmatpush1.msra.mxu0 0.0
        %409 = vmatprep.subr.mxu0 0.0
        %410 = vmatpush1.msra.mxu0 0.0
        %411 = vmatprep.subr.mxu0 0.0
        %412 = vmatpush1.msra.mxu0 0.0
        %413 = vmatprep.subr.mxu0 0.0
        %414 = vmatpush1.msra.mxu0 0.0
        %415 = vmatprep.subr.mxu0 0.0
        %416 = vmatpush1.msra.mxu0 0.0
        %417 = vmatprep.subr.mxu0 0.0
        %418 = vmatpush1.msra.mxu0 0.0
        %419 = vmatprep.subr.mxu0 0.0
        %420 = vmatpush1.msra.mxu0 0.0
        %421 = vmatprep.subr.mxu0 0.0
        %422 = vmatpush1.msra.mxu0 0.0
        %423 = vmatprep.subr.mxu0 0.0
        %424 = vmatpush1.msra.mxu0 0.0
        %425 = vmatprep.subr.mxu0 0.0
        %426 = vmatpush1.msra.mxu0 0.0
        %427 = vmatprep.subr.mxu0 0.0
        %428 = vmatpush1.msra.mxu0 0.0
        %429 = vmatprep.subr.mxu0 0.0
        %430 = vmatpush1.msra.mxu0 0.0
        %431 = vmatprep.subr.mxu0 0.0
        %432 = vmatpush1.msra.mxu0 0.0
        %433 = vmatprep.subr.mxu0 0.0
        %434 = vmatpush1.msra.mxu0 0.0
        %435 = vmatprep.subr.mxu0 0.0
        %436 = vmatpush1.msra.mxu0 0.0
        %437 = vmatprep.subr.mxu0 0.0
        %438 = vmatpush1.msra.mxu0 0.0
        %439 = vmatprep.subr.mxu0 0.0
        %440 = vmatpush1.msra.mxu0 0.0
        %441 = vmatprep.subr.mxu0 0.0
        %442 = vmatpush1.msra.mxu0 0.0
        %443 = vmatprep.subr.mxu0 0.0
        %444 = vmatpush1.msra.mxu0 0.0
        %445 = vmatprep.subr.mxu0 0.0
        %446 = vmatpush1.msra.mxu0 0.0
        %447 = vmatprep.subr.mxu0 0.0
        %448 = vmatpush1.msra.mxu0 0.0
        %449 = vmatprep.subr.mxu0 0.0
        %450 = vmatpush1.msra.mxu0 0.0
        %451 = vmatprep.subr.mxu0 0.0
        %452 = vmatpush1.msra.mxu0 0.0
        %453 = vmatprep.subr.mxu0 0.0
        %454 = vmatpush1.msra.mxu0 0.0
        %455 = vmatprep.subr.mxu0 0.0
        %456 = vmatpush1.msra.mxu0 0.0
        %457 = vmatprep.subr.mxu0 0.0
        %458 = vmatpush1.msra.mxu0 0.0
        %459 = vmatprep.subr.mxu0 0.0
        %460 = vmatpush1.msra.mxu0 0.0
        %461 = vmatprep.mubr.f32.mxu0 0.0
        %462 = vmatmul.mubr.f32.gmra.mrb[0].mxu0 %v301
        %v463 = vpop.f32.mrb[0].mxu0
        %v464 = vadd.f32 0.0, %v463
        %v465 = vpop.f32.mrb[0].mxu0
        %466 = vmatprep.mubr.f32.mxu0 0.0
        %467 = vmatmul.mubr.f32.gmra.mrb[0].mxu0 %v304
        %v468 = vpop.f32.mrb[0].mxu0
        %v469 = vadd.f32 0.0, %v468
        %v470 = vpop.f32.mrb[0].mxu0
        %471 = vmatprep.mubr.f32.mxu0 0.0
        %472 = vmatmul.mubr.f32.gmra.mrb[0].mxu0 %v307
        %v473 = vpop.f32.mrb[0].mxu0
        %v474 = vadd.f32 0.0, %v473
        %v475 = vpop.f32.mrb[0].mxu0
        %476 = vmatprep.mubr.f32.mxu0 0.0
        %477 = vmatmul.mubr.f32.gmra.mrb[0].mxu0 %v310
        %v478 = vpop.f32.mrb[0].mxu0
        %v479 = vadd.f32 0.0, %v478
        %v480 = vpop.f32.mrb[0].mxu0
        %481 = vdwg.mxu0
        %vm482 = vcmask 261120
        %483 = vst.msk [vmem:[%s189] sm:$0xff] %vm482, %v379
        %484 = vst.msk [vmem:[%s189 + $0x8] sm:$0xff] %vm482, %v384
        %485 = vst.msk [vmem:[%s189 + $0x10] sm:$0xff] %vm482, %v389
        %486 = vst.msk [vmem:[%s189 + $0x18] sm:$0xff] %vm482, %v394
        %487 = vst.msk [vmem:[%s189 + $0x20] sm:$0xff] %vm482, %v464
        %488 = vst.msk [vmem:[%s189 + $0x28] sm:$0xff] %vm482, %v469
        %489 = vst.msk [vmem:[%s189 + $0x30] sm:$0xff] %vm482, %v474
        %490 = vst.msk [vmem:[%s189 + $0x38] sm:$0xff] %vm482, %v479
        %s491 = sand.u32 %s96, 1
        %s492 = scalar_lea.sflag [#allocation4], %s491
        %s493 = sand.u32 %s96, 1
        %s494 = smul.addr %s493, 64
        %s495 = scalar_lea.vmem [#allocation5], %s494
        // Predicated region
        $region37: #{tpu_custom_call.1} parent=31 // pred_check
          %p496 = pneg %p106
        $region38: #{tpu_custom_call.1} parent=31 // pred_check_branch
          %498 = sbr.rel (%p496) target = $region40
        $region39: #{tpu_custom_call.1} parent=31 // pred_region
          %s499 = smul.u32 2, %s20
          %s501 = ssub.s32 1024, 1024
          %502 = vsyncadd %s492, %s501
          %s503 = smul.addr %s499, 4
          %s504 = smul.addr %s503, 128
          %s505 = scalar_lea.hbm %s3, %s504
          %s506 = sshll.u32 %s495, 4
          %s507 = int_to_ptr.vmem [resolvable:$true] %s506
          %512 = dma.vmem_to_hbm [thread:$0]  %s507, 1024, %s505, %s492, 128, 128, 8
        $region40: #{tpu_custom_call.1} parent=31 // pred_fallthru
          _
      $region32: #{tpu_custom_call.1} parent=5 // pred_fallthru
        _
      %p513 = scmp.le.s32.totalorder 2, %s15
      // Predicated region
      $region41: #{tpu_custom_call.1} parent=5 // pred_check
        %p514 = pneg %p513
      $region42: #{tpu_custom_call.1} parent=5 // pred_check_branch
        %516 = sbr.rel (%p514) target = $region44
      $region43: #{tpu_custom_call.1} parent=5 // pred_region
        %s517 = ssub.s32 %s15, 2
        // Predicated region
        $region45: #{tpu_custom_call.1} parent=43 // pred_check
          %p518 = pneg %p112
        $region46: #{tpu_custom_call.1} parent=43 // pred_check_branch
          %520 = sbr.rel (%p518) target = $region48
        $region47: #{tpu_custom_call.1} parent=43 // pred_region
          %s521 = sand.u32 %s97, 1
          %s522 = scalar_lea.sflag [#allocation4], %s521
          %s523 = sand.u32 %s97, 1
          %s524 = smul.addr %s523, 64
          %s525 = scalar_lea.vmem [#allocation5], %s524
          %526 = dma.done %s522, 1024
        $region48: #{tpu_custom_call.1} parent=43 // pred_fallthru
          _
      $region44: #{tpu_custom_call.1} parent=5 // pred_fallthru
        _
    $region6: #{tpu_custom_call.1} parent=1 // loop_footer
      %s19 = sadd.s32 1, %s15
    $region7: #{tpu_custom_call.1} parent=1 // loop_footer_branch
      %14 = sbr.rel target = $region3
    $region8: #{tpu_custom_call.1} parent=1 // loop_exit
      _
    %527 = vsyncpa [#allocation3], 1
    %s528 = scalar_lea.sflag [#allocation3], 1
    %529 = vsyncpa %s528, 1
    %530 = vsyncpa [#allocation4], 1
    %s531 = scalar_lea.sflag [#allocation4], 1
    %532 = vsyncpa %s531, 1

</llo_original>
